<compile_context>
chip_gen: v7x
topology: tpu7x:2x2x1
jax: 0.10.0
libtpu: 0.0.40
codegen_flags: <defaults>
</compile_context>

<pallas_src>
import jax
import jax.numpy as jnp
from jax.experimental import pallas as pl
from jax.experimental.pallas import tpu as pltpu

_EPS = 1e-5


# ------------------------------ fused kernel ---------------------------------


def _make_fused_kernel(N, C, H, W):
    M = H * W
    T = N * M
    inv_T = 1.0 / float(T)

    def kernel(x_ref, w1_ref, w2_ref, g1_ref, b1_ref, g2_ref, b2_ref, o_ref):
        x = x_ref[...]                                   # (C, T) lane-dense

        # Per-tap validity masks, built once in-kernel from iota (no HBM
        # operands) and reused by both convs.  They only depend on the spatial
        # position inside an image, identical for every image and channel.
        pos = jax.lax.broadcasted_iota(jnp.int32, (1, T), 1)
        m_in = pos % M                                   # flat pos inside image
        col = pos % W                                    # column inside image
        row_ok = {0: m_in >= W, 1: None, 2: m_in < (M - W)}
        col_ok = {0: col >= 1, 1: None, 2: col < (W - 1)}
        masks = []
        for k in range(9):
            kh, kw = k // 3, k % 3
            conds = [c for c in (row_ok[kh], col_ok[kw]) if c is not None]
            if not conds:
                masks.append(None)                       # center tap: all valid
            else:
                v = conds[0]
                for c in conds[1:]:
                    v = v & c
                masks.append(v.astype(jnp.float32))      # (1, T)

        def conv_bn(inp, w_ref, g_ref, b_ref):
            # 3x3 "same" conv as one (C, 9C) @ (9C, T) MXU matmul: the nine
            # taps are lane-rotated + masked views of `inp`, stacked on the
            # sublane axis.
            taps = []
            for k in range(9):
                kh, kw = k // 3, k % 3
                d = (kh - 1) * W + (kw - 1)      # out[:, i] reads inp[:, i + d]
                xs = inp if d == 0 else pltpu.roll(inp, (-d) % T, axis=1)
                if masks[k] is not None:
                    xs = xs * masks[k]           # zero H/W boundary reads
                taps.append(xs)
            patch = jnp.concatenate(taps, axis=0)                    # (9C, T)
            y = jnp.dot(w_ref[...], patch,
                        preferred_element_type=jnp.float32)          # (C, T)
            # Training-mode BatchNorm, exact two-pass statistics.
            mean = jnp.sum(y, axis=1, keepdims=True) * inv_T
            var = jnp.sum(jnp.square(y - mean), axis=1, keepdims=True) * inv_T
            scale = g_ref[...] * jax.lax.rsqrt(var + _EPS)
            return y * scale + (b_ref[...] - mean * scale)

        h1 = jnp.maximum(conv_bn(x, w1_ref, g1_ref, b1_ref), 0.0)
        h2 = conv_bn(h1, w2_ref, g2_ref, b2_ref)
        o_ref[...] = jnp.maximum(h2 + x, 0.0)

    return kernel


# -------------------------------- wrapper -------------------------------------


def residual_block_forward(x_nchw, params):
    """Forward pass of ResidualBlock. x_nchw: (N, C, H, W) float32."""
    N, C, H, W = x_nchw.shape
    M = H * W
    T = N * M
    assert C % 8 == 0 and T % 128 == 0, "layout wants C%8==0 and N*H*W%128==0"

    # Size gate for the fused single-step path: ~13 * C * T live f32 values
    # (x, out, h1, y, 9-tap patch buffer).  48 MiB keeps headroom on v7x's
    # 64 MiB VMEM; v5e/v6e (128 MiB) are a fortiori fine.
    fused_bytes = 13 * C * T * 4
    assert fused_bytes < 48 * 1024 * 1024, "activations exceed fused VMEM budget"
    # TODO(synk): add a tiled two-stage fallback (per-image streaming with a
    # two-phase BN reduction) for batches whose activations exceed the budget.

    # Channel-major compute layout: (C, N*H*W), one lane per pixel.
    x_ct = jnp.transpose(x_nchw, (1, 0, 2, 3)).reshape(C, T).astype(jnp.float32)

    def per_tap(w):   # (Co, Ci, kh, kw) -> (C, 9C), columns grouped per tap k
        return jnp.transpose(w, (0, 2, 3, 1)).reshape(C, 9 * C).astype(jnp.float32)

    g1 = params["g1"].reshape(C, 1).astype(jnp.float32)
    b1 = params["b1"].reshape(C, 1).astype(jnp.float32)
    g2 = params["g2"].reshape(C, 1).astype(jnp.float32)
    b2 = params["b2"].reshape(C, 1).astype(jnp.float32)

    def full(shape):
        return pl.BlockSpec(shape, lambda i: (0, 0))

    out_ct = pl.pallas_call(
        _make_fused_kernel(N, C, H, W),
        out_shape=jax.ShapeDtypeStruct((C, T), jnp.float32),
        grid=(1,),
        in_specs=[full((C, T)),
                  full((C, 9 * C)), full((C, 9 * C)),
                  full((C, 1)), full((C, 1)), full((C, 1)), full((C, 1))],
        out_specs=full((C, T)),
        compiler_params=pltpu.CompilerParams(
            dimension_semantics=("arbitrary",)),
    )(x_ct, per_tap(params["w1"]), per_tap(params["w2"]), g1, b1, g2, b2)

    return jnp.transpose(out_ct.reshape(C, N, H, W), (1, 0, 2, 3))


# --------------------------- pure-JAX reference -------------------------------


def _reference(x_nchw, params):
    def conv(a, w):
        return jax.lax.conv_general_dilated(
            a, w, window_strides=(1, 1), padding="SAME",
            dimension_numbers=("NCHW", "OIHW", "NCHW"))

    def bn(a, g, b):
        mean = jnp.mean(a, axis=(0, 2, 3), keepdims=True)
        var = jnp.mean((a - mean) ** 2, axis=(0, 2, 3), keepdims=True)
        return ((a - mean) * jax.lax.rsqrt(var + _EPS)
                * g.reshape(1, -1, 1, 1) + b.reshape(1, -1, 1, 1))

    h = jax.nn.relu(bn(conv(x_nchw, params["w1"]), params["g1"], params["b1"]))
    h = bn(conv(h, params["w2"]), params["g2"], params["b2"]) + x_nchw
    return jax.nn.relu(h)


# ----------------------------------- main -------------------------------------


if __name__ == "__main__":
    N, C, H, W = 2, 8, 16, 16   # num_channels = 8, kernel_size = 3

    key = jax.random.PRNGKey(0)
    kx, k1, k2 = jax.random.split(key, 3)

    # Parameter init mirroring the module's __init__:
    # kaiming_normal_(fan_out, relu): std = sqrt(2 / (Co*k*k)); BN gamma=1, beta=0.
    std = (2.0 / (C * 3 * 3)) ** 0.5
    params = {
        "w1": std * jax.random.normal(k1, (C, C, 3, 3), dtype=jnp.float32),
        "w2": std * jax.random.normal(k2, (C, C, 3, 3), dtype=jnp.float32),
        "g1": jnp.ones((C,), jnp.float32), "b1": jnp.zeros((C,), jnp.float32),
        "g2": jnp.ones((C,), jnp.float32), "b2": jnp.zeros((C,), jnp.float32),
    }
    x = jax.random.normal(kx, (N, C, H, W), dtype=jnp.float32)

    out = jax.block_until_ready(residual_block_forward(x, params))
    ref = jax.block_until_ready(_reference(x, params))

    assert out.shape == (N, C, H, W) and out.dtype == jnp.float32
    assert bool(jnp.allclose(out, ref, rtol=1e-3, atol=1e-3)), "mismatch vs reference"

    print("KERNEL_OK")
</pallas_src>

<mosaic_0001>
module attributes {stable_mosaic.version = 11 : i64} {
  func.func @kernel(%arg0: i32, %arg1: memref<8x512xf32, #tpu.memory_space<vmem>>, %arg2: memref<8x72xf32, #tpu.memory_space<vmem>>, %arg3: memref<8x72xf32, #tpu.memory_space<vmem>>, %arg4: memref<8x1xf32, #tpu.memory_space<vmem>>, %arg5: memref<8x1xf32, #tpu.memory_space<vmem>>, %arg6: memref<8x1xf32, #tpu.memory_space<vmem>>, %arg7: memref<8x1xf32, #tpu.memory_space<vmem>>, %arg8: memref<8x512xf32, #tpu.memory_space<vmem>>) attributes {dimension_semantics = [#tpu.dimension_semantics<arbitrary>], iteration_bounds = array<i64: 1>, scalar_prefetch = 0 : i64, scratch_operands = 0 : i64, tpu.core_type = #tpu.core_type<tc>, window_params = [{pipeline_mode = #tpu.pipeline_mode<synchronous>, transform_indices = @transform_0, window_bounds = array<i64: 8, 512>}, {pipeline_mode = #tpu.pipeline_mode<synchronous>, transform_indices = @transform_1, window_bounds = array<i64: 8, 72>}, {pipeline_mode = #tpu.pipeline_mode<synchronous>, transform_indices = @transform_2, window_bounds = array<i64: 8, 72>}, {pipeline_mode = #tpu.pipeline_mode<synchronous>, transform_indices = @transform_3, window_bounds = array<i64: 8, 1>}, {pipeline_mode = #tpu.pipeline_mode<synchronous>, transform_indices = @transform_4, window_bounds = array<i64: 8, 1>}, {pipeline_mode = #tpu.pipeline_mode<synchronous>, transform_indices = @transform_5, window_bounds = array<i64: 8, 1>}, {pipeline_mode = #tpu.pipeline_mode<synchronous>, transform_indices = @transform_6, window_bounds = array<i64: 8, 1>}, {pipeline_mode = #tpu.pipeline_mode<synchronous>, transform_indices = @transform_7, window_bounds = array<i64: 8, 512>}]} {
    %c0 = arith.constant 0 : index
    %c0_0 = arith.constant 0 : index
    %0 = vector.load %arg1[%c0, %c0_0] : memref<8x512xf32, #tpu.memory_space<vmem>>, vector<8x512xf32>
    %1 = tpu.iota {dimensions = array<i32: 1>} : vector<1x512xi32>
    %c256_i32 = arith.constant 256 : i32
    %c0_i32 = arith.constant 0 : i32
    %2 = arith.cmpi eq, %c256_i32, %c0_i32 : i32
    %c1_i32 = arith.constant 1 : i32
    %3 = arith.select %2, %c1_i32, %c256_i32 : i32
    %4 = vector.broadcast %3 : i32 to vector<1x512xi32>
    %5 = arith.remsi %1, %4 : vector<1x512xi32>
    %c0_i32_1 = arith.constant 0 : i32
    %6 = vector.broadcast %c0_i32_1 : i32 to vector<1x512xi32>
    %7 = arith.cmpi ne, %5, %6 : vector<1x512xi32>
    %c0_i32_2 = arith.constant 0 : i32
    %8 = vector.broadcast %c0_i32_2 : i32 to vector<1x512xi32>
    %9 = arith.cmpi slt, %5, %8 : vector<1x512xi32>
    %c0_i32_3 = arith.constant 0 : i32
    %10 = arith.cmpi slt, %3, %c0_i32_3 : i32
    %11 = vector.broadcast %10 : i1 to vector<1x512xi1>
    %12 = vector.broadcast %11 : vector<1x512xi1> to vector<1x512xi1>
    %13 = arith.xori %9, %12 : vector<1x512xi1>
    %14 = arith.andi %13, %7 : vector<1x512xi1>
    %15 = vector.broadcast %3 : i32 to vector<1x512xi32>
    %16 = arith.addi %5, %15 : vector<1x512xi32>
    %17 = arith.select %14, %16, %5 : vector<1x512xi1>, vector<1x512xi32>
    %c16_i32 = arith.constant 16 : i32
    %c0_i32_4 = arith.constant 0 : i32
    %18 = arith.cmpi eq, %c16_i32, %c0_i32_4 : i32
    %c1_i32_5 = arith.constant 1 : i32
    %19 = arith.select %18, %c1_i32_5, %c16_i32 : i32
    %20 = vector.broadcast %19 : i32 to vector<1x512xi32>
    %21 = arith.remsi %1, %20 : vector<1x512xi32>
    %c0_i32_6 = arith.constant 0 : i32
    %22 = vector.broadcast %c0_i32_6 : i32 to vector<1x512xi32>
    %23 = arith.cmpi ne, %21, %22 : vector<1x512xi32>
    %c0_i32_7 = arith.constant 0 : i32
    %24 = vector.broadcast %c0_i32_7 : i32 to vector<1x512xi32>
    %25 = arith.cmpi slt, %21, %24 : vector<1x512xi32>
    %c0_i32_8 = arith.constant 0 : i32
    %26 = arith.cmpi slt, %19, %c0_i32_8 : i32
    %27 = vector.broadcast %26 : i1 to vector<1x512xi1>
    %28 = vector.broadcast %27 : vector<1x512xi1> to vector<1x512xi1>
    %29 = arith.xori %25, %28 : vector<1x512xi1>
    %30 = arith.andi %29, %23 : vector<1x512xi1>
    %31 = vector.broadcast %19 : i32 to vector<1x512xi32>
    %32 = arith.addi %21, %31 : vector<1x512xi32>
    %33 = arith.select %30, %32, %21 : vector<1x512xi1>, vector<1x512xi32>
    %c16_i32_9 = arith.constant 16 : i32
    %34 = vector.broadcast %c16_i32_9 : i32 to vector<1x512xi32>
    %35 = arith.cmpi sge, %17, %34 : vector<1x512xi32>
    %c240_i32 = arith.constant 240 : i32
    %36 = vector.broadcast %c240_i32 : i32 to vector<1x512xi32>
    %37 = arith.cmpi slt, %17, %36 : vector<1x512xi32>
    %c1_i32_10 = arith.constant 1 : i32
    %38 = vector.broadcast %c1_i32_10 : i32 to vector<1x512xi32>
    %39 = arith.cmpi sge, %33, %38 : vector<1x512xi32>
    %c15_i32 = arith.constant 15 : i32
    %40 = vector.broadcast %c15_i32 : i32 to vector<1x512xi32>
    %41 = arith.cmpi slt, %33, %40 : vector<1x512xi32>
    %42 = arith.andi %35, %39 : vector<1x512xi1>
    %43 = arith.extui %42 : vector<1x512xi1> to vector<1x512xi32>
    %44 = arith.sitofp %43 : vector<1x512xi32> to vector<1x512xf32>
    %45 = arith.extui %35 : vector<1x512xi1> to vector<1x512xi32>
    %46 = arith.sitofp %45 : vector<1x512xi32> to vector<1x512xf32>
    %47 = arith.andi %35, %41 : vector<1x512xi1>
    %48 = arith.extui %47 : vector<1x512xi1> to vector<1x512xi32>
    %49 = arith.sitofp %48 : vector<1x512xi32> to vector<1x512xf32>
    %50 = arith.extui %39 : vector<1x512xi1> to vector<1x512xi32>
    %51 = arith.sitofp %50 : vector<1x512xi32> to vector<1x512xf32>
    %52 = arith.extui %41 : vector<1x512xi1> to vector<1x512xi32>
    %53 = arith.sitofp %52 : vector<1x512xi32> to vector<1x512xf32>
    %54 = arith.andi %37, %39 : vector<1x512xi1>
    %55 = arith.extui %54 : vector<1x512xi1> to vector<1x512xi32>
    %56 = arith.sitofp %55 : vector<1x512xi32> to vector<1x512xf32>
    %57 = arith.extui %37 : vector<1x512xi1> to vector<1x512xi32>
    %58 = arith.sitofp %57 : vector<1x512xi32> to vector<1x512xf32>
    %59 = arith.andi %37, %41 : vector<1x512xi1>
    %60 = arith.extui %59 : vector<1x512xi1> to vector<1x512xi32>
    %61 = arith.sitofp %60 : vector<1x512xi32> to vector<1x512xf32>
    %c17_i32 = arith.constant 17 : i32
    %62 = tpu.dynamic_rotate %0 by %c17_i32 dim 1 : vector<8x512xf32>, i32 -> vector<8x512xf32>
    %63 = vector.broadcast %44 : vector<1x512xf32> to vector<8x512xf32>
    %64 = arith.mulf %62, %63 : vector<8x512xf32>
    %c16_i32_11 = arith.constant 16 : i32
    %65 = tpu.dynamic_rotate %0 by %c16_i32_11 dim 1 : vector<8x512xf32>, i32 -> vector<8x512xf32>
    %66 = vector.broadcast %46 : vector<1x512xf32> to vector<8x512xf32>
    %67 = arith.mulf %65, %66 : vector<8x512xf32>
    %c15_i32_12 = arith.constant 15 : i32
    %68 = tpu.dynamic_rotate %0 by %c15_i32_12 dim 1 : vector<8x512xf32>, i32 -> vector<8x512xf32>
    %69 = vector.broadcast %49 : vector<1x512xf32> to vector<8x512xf32>
    %70 = arith.mulf %68, %69 : vector<8x512xf32>
    %c1_i32_13 = arith.constant 1 : i32
    %71 = tpu.dynamic_rotate %0 by %c1_i32_13 dim 1 : vector<8x512xf32>, i32 -> vector<8x512xf32>
    %72 = vector.broadcast %51 : vector<1x512xf32> to vector<8x512xf32>
    %73 = arith.mulf %71, %72 : vector<8x512xf32>
    %c511_i32 = arith.constant 511 : i32
    %74 = tpu.dynamic_rotate %0 by %c511_i32 dim 1 : vector<8x512xf32>, i32 -> vector<8x512xf32>
    %75 = vector.broadcast %53 : vector<1x512xf32> to vector<8x512xf32>
    %76 = arith.mulf %74, %75 : vector<8x512xf32>
    %c497_i32 = arith.constant 497 : i32
    %77 = tpu.dynamic_rotate %0 by %c497_i32 dim 1 : vector<8x512xf32>, i32 -> vector<8x512xf32>
    %78 = vector.broadcast %56 : vector<1x512xf32> to vector<8x512xf32>
    %79 = arith.mulf %77, %78 : vector<8x512xf32>
    %c496_i32 = arith.constant 496 : i32
    %80 = tpu.dynamic_rotate %0 by %c496_i32 dim 1 : vector<8x512xf32>, i32 -> vector<8x512xf32>
    %81 = vector.broadcast %58 : vector<1x512xf32> to vector<8x512xf32>
    %82 = arith.mulf %80, %81 : vector<8x512xf32>
    %c495_i32 = arith.constant 495 : i32
    %83 = tpu.dynamic_rotate %0 by %c495_i32 dim 1 : vector<8x512xf32>, i32 -> vector<8x512xf32>
    %84 = vector.broadcast %61 : vector<1x512xf32> to vector<8x512xf32>
    %85 = arith.mulf %83, %84 : vector<8x512xf32>
    %86 = tpu.concatenate %64, %67, %70, %73, %0, %76, %79, %82, %85 in 0 : vector<8x512xf32>, vector<8x512xf32>, vector<8x512xf32>, vector<8x512xf32>, vector<8x512xf32>, vector<8x512xf32>, vector<8x512xf32>, vector<8x512xf32>, vector<8x512xf32> -> vector<72x512xf32>
    %c0_14 = arith.constant 0 : index
    %c0_15 = arith.constant 0 : index
    %87 = vector.load %arg2[%c0_14, %c0_15] : memref<8x72xf32, #tpu.memory_space<vmem>>, vector<8x72xf32>
    %cst = arith.constant dense<0.000000e+00> : vector<8x512xf32>
    %88 = tpu.matmul %87, %86, %cst {dimension_numbers = #tpu.dot_dimension_numbers<[1], [0], [0], [1], [0, 0, 1, 1], [], []>} : vector<8x72xf32>, vector<72x512xf32>, vector<8x512xf32> -> vector<8x512xf32>
    %cst_16 = arith.constant dense<0.000000e+00> : vector<8xf32>
    %89 = vector.multi_reduction <add>, %88, %cst_16 [1] : vector<8x512xf32> to vector<8xf32>
    %90 = vector.shape_cast %89 : vector<8xf32> to vector<8x1xf32>
    %cst_17 = arith.constant 0.001953125 : f32
    %91 = vector.broadcast %cst_17 : f32 to vector<8x1xf32>
    %92 = arith.mulf %90, %91 : vector<8x1xf32>
    %93 = vector.broadcast %92 : vector<8x1xf32> to vector<8x512xf32>
    %94 = arith.subf %88, %93 : vector<8x512xf32>
    %95 = arith.mulf %94, %94 : vector<8x512xf32>
    %cst_18 = arith.constant dense<0.000000e+00> : vector<8xf32>
    %96 = vector.multi_reduction <add>, %95, %cst_18 [1] : vector<8x512xf32> to vector<8xf32>
    %97 = vector.shape_cast %96 : vector<8xf32> to vector<8x1xf32>
    %cst_19 = arith.constant 0.001953125 : f32
    %98 = vector.broadcast %cst_19 : f32 to vector<8x1xf32>
    %99 = arith.mulf %97, %98 : vector<8x1xf32>
    %c0_20 = arith.constant 0 : index
    %c0_21 = arith.constant 0 : index
    %100 = vector.load %arg4[%c0_20, %c0_21] : memref<8x1xf32, #tpu.memory_space<vmem>>, vector<8x1xf32>
    %cst_22 = arith.constant 9.99999974E-6 : f32
    %101 = vector.broadcast %cst_22 : f32 to vector<8x1xf32>
    %102 = arith.addf %99, %101 : vector<8x1xf32>
    %103 = math.rsqrt %102 : vector<8x1xf32>
    %104 = arith.mulf %100, %103 : vector<8x1xf32>
    %105 = vector.broadcast %104 : vector<8x1xf32> to vector<8x512xf32>
    %106 = arith.mulf %88, %105 : vector<8x512xf32>
    %c0_23 = arith.constant 0 : index
    %c0_24 = arith.constant 0 : index
    %107 = vector.load %arg5[%c0_23, %c0_24] : memref<8x1xf32, #tpu.memory_space<vmem>>, vector<8x1xf32>
    %108 = arith.mulf %92, %104 : vector<8x1xf32>
    %109 = arith.subf %107, %108 : vector<8x1xf32>
    %110 = vector.broadcast %109 : vector<8x1xf32> to vector<8x512xf32>
    %111 = arith.addf %106, %110 : vector<8x512xf32>
    %cst_25 = arith.constant 0.000000e+00 : f32
    %112 = vector.broadcast %cst_25 : f32 to vector<8x512xf32>
    %113 = arith.maximumf %111, %112 : vector<8x512xf32>
    %c17_i32_26 = arith.constant 17 : i32
    %114 = tpu.dynamic_rotate %113 by %c17_i32_26 dim 1 : vector<8x512xf32>, i32 -> vector<8x512xf32>
    %115 = vector.broadcast %44 : vector<1x512xf32> to vector<8x512xf32>
    %116 = arith.mulf %114, %115 : vector<8x512xf32>
    %c16_i32_27 = arith.constant 16 : i32
    %117 = tpu.dynamic_rotate %113 by %c16_i32_27 dim 1 : vector<8x512xf32>, i32 -> vector<8x512xf32>
    %118 = vector.broadcast %46 : vector<1x512xf32> to vector<8x512xf32>
    %119 = arith.mulf %117, %118 : vector<8x512xf32>
    %c15_i32_28 = arith.constant 15 : i32
    %120 = tpu.dynamic_rotate %113 by %c15_i32_28 dim 1 : vector<8x512xf32>, i32 -> vector<8x512xf32>
    %121 = vector.broadcast %49 : vector<1x512xf32> to vector<8x512xf32>
    %122 = arith.mulf %120, %121 : vector<8x512xf32>
    %c1_i32_29 = arith.constant 1 : i32
    %123 = tpu.dynamic_rotate %113 by %c1_i32_29 dim 1 : vector<8x512xf32>, i32 -> vector<8x512xf32>
    %124 = vector.broadcast %51 : vector<1x512xf32> to vector<8x512xf32>
    %125 = arith.mulf %123, %124 : vector<8x512xf32>
    %c511_i32_30 = arith.constant 511 : i32
    %126 = tpu.dynamic_rotate %113 by %c511_i32_30 dim 1 : vector<8x512xf32>, i32 -> vector<8x512xf32>
    %127 = vector.broadcast %53 : vector<1x512xf32> to vector<8x512xf32>
    %128 = arith.mulf %126, %127 : vector<8x512xf32>
    %c497_i32_31 = arith.constant 497 : i32
    %129 = tpu.dynamic_rotate %113 by %c497_i32_31 dim 1 : vector<8x512xf32>, i32 -> vector<8x512xf32>
    %130 = vector.broadcast %56 : vector<1x512xf32> to vector<8x512xf32>
    %131 = arith.mulf %129, %130 : vector<8x512xf32>
    %c496_i32_32 = arith.constant 496 : i32
    %132 = tpu.dynamic_rotate %113 by %c496_i32_32 dim 1 : vector<8x512xf32>, i32 -> vector<8x512xf32>
    %133 = vector.broadcast %58 : vector<1x512xf32> to vector<8x512xf32>
    %134 = arith.mulf %132, %133 : vector<8x512xf32>
    %c495_i32_33 = arith.constant 495 : i32
    %135 = tpu.dynamic_rotate %113 by %c495_i32_33 dim 1 : vector<8x512xf32>, i32 -> vector<8x512xf32>
    %136 = vector.broadcast %61 : vector<1x512xf32> to vector<8x512xf32>
    %137 = arith.mulf %135, %136 : vector<8x512xf32>
    %138 = tpu.concatenate %116, %119, %122, %125, %113, %128, %131, %134, %137 in 0 : vector<8x512xf32>, vector<8x512xf32>, vector<8x512xf32>, vector<8x512xf32>, vector<8x512xf32>, vector<8x512xf32>, vector<8x512xf32>, vector<8x512xf32>, vector<8x512xf32> -> vector<72x512xf32>
    %c0_34 = arith.constant 0 : index
    %c0_35 = arith.constant 0 : index
    %139 = vector.load %arg3[%c0_34, %c0_35] : memref<8x72xf32, #tpu.memory_space<vmem>>, vector<8x72xf32>
    %cst_36 = arith.constant dense<0.000000e+00> : vector<8x512xf32>
    %140 = tpu.matmul %139, %138, %cst_36 {dimension_numbers = #tpu.dot_dimension_numbers<[1], [0], [0], [1], [0, 0, 1, 1], [], []>} : vector<8x72xf32>, vector<72x512xf32>, vector<8x512xf32> -> vector<8x512xf32>
    %cst_37 = arith.constant dense<0.000000e+00> : vector<8xf32>
    %141 = vector.multi_reduction <add>, %140, %cst_37 [1] : vector<8x512xf32> to vector<8xf32>
    %142 = vector.shape_cast %141 : vector<8xf32> to vector<8x1xf32>
    %cst_38 = arith.constant 0.001953125 : f32
    %143 = vector.broadcast %cst_38 : f32 to vector<8x1xf32>
    %144 = arith.mulf %142, %143 : vector<8x1xf32>
    %145 = vector.broadcast %144 : vector<8x1xf32> to vector<8x512xf32>
    %146 = arith.subf %140, %145 : vector<8x512xf32>
    %147 = arith.mulf %146, %146 : vector<8x512xf32>
    %cst_39 = arith.constant dense<0.000000e+00> : vector<8xf32>
    %148 = vector.multi_reduction <add>, %147, %cst_39 [1] : vector<8x512xf32> to vector<8xf32>
    %149 = vector.shape_cast %148 : vector<8xf32> to vector<8x1xf32>
    %cst_40 = arith.constant 0.001953125 : f32
    %150 = vector.broadcast %cst_40 : f32 to vector<8x1xf32>
    %151 = arith.mulf %149, %150 : vector<8x1xf32>
    %c0_41 = arith.constant 0 : index
    %c0_42 = arith.constant 0 : index
    %152 = vector.load %arg6[%c0_41, %c0_42] : memref<8x1xf32, #tpu.memory_space<vmem>>, vector<8x1xf32>
    %cst_43 = arith.constant 9.99999974E-6 : f32
    %153 = vector.broadcast %cst_43 : f32 to vector<8x1xf32>
    %154 = arith.addf %151, %153 : vector<8x1xf32>
    %155 = math.rsqrt %154 : vector<8x1xf32>
    %156 = arith.mulf %152, %155 : vector<8x1xf32>
    %157 = vector.broadcast %156 : vector<8x1xf32> to vector<8x512xf32>
    %158 = arith.mulf %140, %157 : vector<8x512xf32>
    %c0_44 = arith.constant 0 : index
    %c0_45 = arith.constant 0 : index
    %159 = vector.load %arg7[%c0_44, %c0_45] : memref<8x1xf32, #tpu.memory_space<vmem>>, vector<8x1xf32>
    %160 = arith.mulf %144, %156 : vector<8x1xf32>
    %161 = arith.subf %159, %160 : vector<8x1xf32>
    %162 = vector.broadcast %161 : vector<8x1xf32> to vector<8x512xf32>
    %163 = arith.addf %158, %162 : vector<8x512xf32>
    %164 = arith.addf %163, %0 : vector<8x512xf32>
    %cst_46 = arith.constant 0.000000e+00 : f32
    %165 = vector.broadcast %cst_46 : f32 to vector<8x512xf32>
    %166 = arith.maximumf %164, %165 : vector<8x512xf32>
    %c0_47 = arith.constant 0 : index
    %c0_48 = arith.constant 0 : index
    %167 = vector.load %arg8[%c0_47, %c0_48] : memref<8x512xf32, #tpu.memory_space<vmem>>, vector<8x512xf32>
    tpu.vector_store %arg8[%c0_47, %c0_48], %166 {strides = array<i32>} : memref<8x512xf32, #tpu.memory_space<vmem>>, vector<8x512xf32>,
    return
  }
  func.func @transform_0(%arg0: i32) -> (i32, i32) {
    %c0_i32 = arith.constant 0 : i32
    %c0_i32_0 = arith.constant 0 : i32
    %c0_i32_1 = arith.constant 0 : i32
    return %c0_i32, %c0_i32_0 : i32, i32
  }
  func.func @transform_1(%arg0: i32) -> (i32, i32) {
    %c0_i32 = arith.constant 0 : i32
    %c0_i32_0 = arith.constant 0 : i32
    %c0_i32_1 = arith.constant 0 : i32
    return %c0_i32, %c0_i32_0 : i32, i32
  }
  func.func @transform_2(%arg0: i32) -> (i32, i32) {
    %c0_i32 = arith.constant 0 : i32
    %c0_i32_0 = arith.constant 0 : i32
    %c0_i32_1 = arith.constant 0 : i32
    return %c0_i32, %c0_i32_0 : i32, i32
  }
  func.func @transform_3(%arg0: i32) -> (i32, i32) {
    %c0_i32 = arith.constant 0 : i32
    %c0_i32_0 = arith.constant 0 : i32
    %c0_i32_1 = arith.constant 0 : i32
    return %c0_i32, %c0_i32_0 : i32, i32
  }
  func.func @transform_4(%arg0: i32) -> (i32, i32) {
    %c0_i32 = arith.constant 0 : i32
    %c0_i32_0 = arith.constant 0 : i32
    %c0_i32_1 = arith.constant 0 : i32
    return %c0_i32, %c0_i32_0 : i32, i32
  }
  func.func @transform_5(%arg0: i32) -> (i32, i32) {
    %c0_i32 = arith.constant 0 : i32
    %c0_i32_0 = arith.constant 0 : i32
    %c0_i32_1 = arith.constant 0 : i32
    return %c0_i32, %c0_i32_0 : i32, i32
  }
  func.func @transform_6(%arg0: i32) -> (i32, i32) {
    %c0_i32 = arith.constant 0 : i32
    %c0_i32_0 = arith.constant 0 : i32
    %c0_i32_1 = arith.constant 0 : i32
    return %c0_i32, %c0_i32_0 : i32, i32
  }
  func.func @transform_7(%arg0: i32) -> (i32, i32) {
    %c0_i32 = arith.constant 0 : i32
    %c0_i32_0 = arith.constant 0 : i32
    %c0_i32_1 = arith.constant 0 : i32
    return %c0_i32, %c0_i32_0 : i32, i32
  }
}

</mosaic_0001>

<llo_original>
// kernel: tpu_custom_call.1
$region0: #{tpu_custom_call.1}
  #allocation0 [shape = 'u32[]', space=smem, size = 0x4, offset = 0x4, fixed_abs, tag = 'smem constant byte address 0x4 - core index']
  #allocation1 [shape = 'u32[144,128]{1,0:T(1,128)}', space=vmem, size = 0x12000, scoped, tag = 'internal scratch']
  %s0 = inlined_call_operand.vmem [shape: f32[8,512], index: 0, kind: input, shape index: {}]
  %s1 = inlined_call_operand.hbm [shape: f32[8,72], index: 1, kind: input, shape index: {}]
  %s2 = inlined_call_operand.vmem [shape: f32[8,72], index: 2, kind: input, shape index: {}]
  %s3 = inlined_call_operand.vmem [shape: f32[8,1], index: 3, kind: input, shape index: {}]
  %s4 = inlined_call_operand.vmem [shape: f32[8,1], index: 4, kind: input, shape index: {}]
  %s5 = inlined_call_operand.vmem [shape: f32[8,1], index: 5, kind: input, shape index: {}]
  %s6 = inlined_call_operand.vmem [shape: f32[8,1], index: 6, kind: input, shape index: {}]
  %s7 = inlined_call_operand.hbm [shape: f32[8,512], index: 7, kind: output, shape index: {}]
  %s8 = sld [smem:[#allocation0]]
  $region42: #{tpu_custom_call.1} parent=0
    _
  %s10 = ssub.s32 1, %s8
  %s11 = scalar_select 0, %s10, %s8
  $region1: #{tpu_custom_call.1} parent=0
    #allocation2 [shape = 'u8[4096]{0}', space=vmem, size = 0x1000, scoped, tag = 'input window, operand 1, single buffered']
    #allocation3 [shape = 's32[1]{0}', space=sflag, size = 0x4, scoped, tag = 'scoped memory for tpu_custom_call.1']
    #allocation4 [shape = 's32[1]{0}', space=sflag, size = 0x4, scoped, tag = 'scoped memory for tpu_custom_call.1']
    #allocation5 [shape = 'u8[16384]{0}', space=vmem, size = 0x4000, scoped, tag = 'output window, operand 0, single buffered']
    %12 = vsyncpa [#allocation3], 0
    %13 = vsyncpa [#allocation4], 0
    // Predicated region
    $region2: #{tpu_custom_call.1} parent=1 // pred_check
      _
    $region3: #{tpu_custom_call.1} parent=1 // pred_check_branch
      %15 = sbr.rel (0) target = $region5
    $region4: #{tpu_custom_call.1} parent=1 // pred_region
      _
    $region5: #{tpu_custom_call.1} parent=1 // pred_fallthru
      _
    // Predicated region
    $region6: #{tpu_custom_call.1} parent=1 // pred_check
      _
    $region7: #{tpu_custom_call.1} parent=1 // pred_check_branch
      %17 = sbr.rel (0) target = $region9
    $region8: #{tpu_custom_call.1} parent=1 // pred_region
      %s19 = ssub.s32 128, 128
      %20 = vsyncadd [#allocation3], %s19
      %s22 = sshll.u32 [#allocation2], 4
      %s23 = int_to_ptr.vmem [resolvable:$true] %s22
      %25 = dma.hbm_to_vmem [thread:$0]  %s1, 128, %s23, [#allocation3]
    $region9: #{tpu_custom_call.1} parent=1 // pred_fallthru
      _
    // Predicated region
    $region10: #{tpu_custom_call.1} parent=1 // pred_check
      _
    $region11: #{tpu_custom_call.1} parent=1 // pred_check_branch
      %27 = sbr.rel (0) target = $region13
    $region12: #{tpu_custom_call.1} parent=1 // pred_region
      _
    $region13: #{tpu_custom_call.1} parent=1 // pred_fallthru
      _
    // Predicated region
    $region14: #{tpu_custom_call.1} parent=1 // pred_check
      _
    $region15: #{tpu_custom_call.1} parent=1 // pred_check_branch
      %29 = sbr.rel (0) target = $region17
    $region16: #{tpu_custom_call.1} parent=1 // pred_region
      _
    $region17: #{tpu_custom_call.1} parent=1 // pred_fallthru
      _
    // Predicated region
    $region18: #{tpu_custom_call.1} parent=1 // pred_check
      _
    $region19: #{tpu_custom_call.1} parent=1 // pred_check_branch
      %31 = sbr.rel (0) target = $region21
    $region20: #{tpu_custom_call.1} parent=1 // pred_region
      _
    $region21: #{tpu_custom_call.1} parent=1 // pred_fallthru
      _
    // Predicated region
    $region22: #{tpu_custom_call.1} parent=1 // pred_check
      _
    $region23: #{tpu_custom_call.1} parent=1 // pred_check_branch
      %33 = sbr.rel (0) target = $region25
    $region24: #{tpu_custom_call.1} parent=1 // pred_region
      _
    $region25: #{tpu_custom_call.1} parent=1 // pred_fallthru
      _
    // Predicated region
    $region26: #{tpu_custom_call.1} parent=1 // pred_check
      _
    $region27: #{tpu_custom_call.1} parent=1 // pred_check_branch
      %35 = sbr.rel (0) target = $region29
    $region28: #{tpu_custom_call.1} parent=1 // pred_region
      _
    $region29: #{tpu_custom_call.1} parent=1 // pred_fallthru
      _
    // Predicated region
    $region30: #{tpu_custom_call.1} parent=1 // pred_check
      _
    $region31: #{tpu_custom_call.1} parent=1 // pred_check_branch
      %37 = sbr.rel (0) target = $region33
    $region32: #{tpu_custom_call.1} parent=1 // pred_region
      %38 = dma.done [#allocation3], 128
    $region33: #{tpu_custom_call.1} parent=1 // pred_fallthru
      _
    %v39 = vld [vmem:[%s0] sm:$0xff]
    %v40 = vld [vmem:[%s0 + $0x8] sm:$0xff]
    %v41 = vld [vmem:[%s0 + $0x10] sm:$0xff]
    %v42 = vld [vmem:[%s0 + $0x18] sm:$0xff]
    %v43 = vlaneseq
    %v44 = vand.u32 %v43, 127
    %v45 = vadd.s32 %v44, 128
    %v46 = vadd.s32 %v44, 256
    %v47 = vadd.s32 %v44, 384
    %vm48 = vcmp.lt.s32.totalorder %v44, 0
    %v49 = vsub.s32 0, %v44
    %v50 = vsel %vm48, %v49, %v44
    %v51 = vshrl.u32 %v50, 8
    %v52 = vand.u32 %v50, 255
    %v53 = vsub.s32 0, %v52
    %v54 = vsel %vm48, %v53, %v52
    %vm55 = vcmp.lt.s32.totalorder %v45, 0
    %v56 = vsub.s32 0, %v45
    %v57 = vsel %vm55, %v56, %v45
    %v58 = vshrl.u32 %v57, 8
    %v59 = vand.u32 %v57, 255
    %v60 = vsub.s32 0, %v59
    %v61 = vsel %vm55, %v60, %v59
    %vm62 = vcmp.lt.s32.totalorder %v46, 0
    %v63 = vsub.s32 0, %v46
    %v64 = vsel %vm62, %v63, %v46
    %v65 = vshrl.u32 %v64, 8
    %v66 = vand.u32 %v64, 255
    %v67 = vsub.s32 0, %v66
    %v68 = vsel %vm62, %v67, %v66
    %vm69 = vcmp.lt.s32.totalorder %v47, 0
    %v70 = vsub.s32 0, %v47
    %v71 = vsel %vm69, %v70, %v47
    %v72 = vshrl.u32 %v71, 8
    %v73 = vand.u32 %v71, 255
    %v74 = vsub.s32 0, %v73
    %v75 = vsel %vm69, %v74, %v73
    %vm76 = vcmp.ne.s32.totalorder %v54, 0
    %vm77 = vcmp.ne.s32.totalorder %v61, 0
    %vm78 = vcmp.ne.s32.totalorder %v68, 0
    %vm79 = vcmp.ne.s32.totalorder %v75, 0
    %vm80 = vcmp.lt.s32.totalorder %v54, 0
    %vm81 = vcmp.lt.s32.totalorder %v61, 0
    %vm82 = vcmp.lt.s32.totalorder %v68, 0
    %vm83 = vcmp.lt.s32.totalorder %v75, 0
    %vm84 = vmand %vm80, %vm76
    %vm85 = vmand %vm81, %vm77
    %vm86 = vmand %vm82, %vm78
    %vm87 = vmand %vm83, %vm79
    %v88 = vadd.s32 %v54, 256
    %v89 = vadd.s32 %v61, 256
    %v90 = vadd.s32 %v68, 256
    %v91 = vadd.s32 %v75, 256
    %v92 = vsel %vm84, %v88, %v54
    %v93 = vsel %vm85, %v89, %v61
    %v94 = vsel %vm86, %v90, %v68
    %v95 = vsel %vm87, %v91, %v75
    %vm96 = vcmp.lt.s32.totalorder %v44, 0
    %v97 = vsub.s32 0, %v44
    %v98 = vsel %vm96, %v97, %v44
    %v99 = vshrl.u32 %v98, 4
    %v100 = vand.u32 %v98, 15
    %v101 = vsub.s32 0, %v100
    %v102 = vsel %vm96, %v101, %v100
    %vm103 = vcmp.lt.s32.totalorder %v45, 0
    %v104 = vsub.s32 0, %v45
    %v105 = vsel %vm103, %v104, %v45
    %v106 = vshrl.u32 %v105, 4
    %v107 = vand.u32 %v105, 15
    %v108 = vsub.s32 0, %v107
    %v109 = vsel %vm103, %v108, %v107
    %vm110 = vcmp.lt.s32.totalorder %v46, 0
    %v111 = vsub.s32 0, %v46
    %v112 = vsel %vm110, %v111, %v46
    %v113 = vshrl.u32 %v112, 4
    %v114 = vand.u32 %v112, 15
    %v115 = vsub.s32 0, %v114
    %v116 = vsel %vm110, %v115, %v114
    %vm117 = vcmp.lt.s32.totalorder %v47, 0
    %v118 = vsub.s32 0, %v47
    %v119 = vsel %vm117, %v118, %v47
    %v120 = vshrl.u32 %v119, 4
    %v121 = vand.u32 %v119, 15
    %v122 = vsub.s32 0, %v121
    %v123 = vsel %vm117, %v122, %v121
    %vm124 = vcmp.ne.s32.totalorder %v102, 0
    %vm125 = vcmp.ne.s32.totalorder %v109, 0
    %vm126 = vcmp.ne.s32.totalorder %v116, 0
    %vm127 = vcmp.ne.s32.totalorder %v123, 0
    %vm128 = vcmp.lt.s32.totalorder %v102, 0
    %vm129 = vcmp.lt.s32.totalorder %v109, 0
    %vm130 = vcmp.lt.s32.totalorder %v116, 0
    %vm131 = vcmp.lt.s32.totalorder %v123, 0
    %vm132 = vmand %vm128, %vm124
    %vm133 = vmand %vm129, %vm125
    %vm134 = vmand %vm130, %vm126
    %vm135 = vmand %vm131, %vm127
    %v136 = vadd.s32 %v102, 16
    %v137 = vadd.s32 %v109, 16
    %v138 = vadd.s32 %v116, 16
    %v139 = vadd.s32 %v123, 16
    %v140 = vsel %vm132, %v136, %v102
    %v141 = vsel %vm133, %v137, %v109
    %v142 = vsel %vm134, %v138, %v116
    %v143 = vsel %vm135, %v139, %v123
    %vm144 = vcmp.ge.s32.totalorder %v92, 16
    %vm145 = vcmp.ge.s32.totalorder %v93, 16
    %vm146 = vcmp.ge.s32.totalorder %v94, 16
    %vm147 = vcmp.ge.s32.totalorder %v95, 16
    %vm148 = vcmp.lt.s32.totalorder %v92, 240
    %vm149 = vcmp.lt.s32.totalorder %v93, 240
    %vm150 = vcmp.lt.s32.totalorder %v94, 240
    %vm151 = vcmp.lt.s32.totalorder %v95, 240
    %vm152 = vcmp.ge.s32.totalorder %v140, 1
    %vm153 = vcmp.ge.s32.totalorder %v141, 1
    %vm154 = vcmp.ge.s32.totalorder %v142, 1
    %vm155 = vcmp.ge.s32.totalorder %v143, 1
    %vm156 = vcmp.lt.s32.totalorder %v140, 15
    %vm157 = vcmp.lt.s32.totalorder %v141, 15
    %vm158 = vcmp.lt.s32.totalorder %v142, 15
    %vm159 = vcmp.lt.s32.totalorder %v143, 15
    %vm160 = vmand %vm144, %vm152
    %vm161 = vmand %vm145, %vm153
    %vm162 = vmand %vm146, %vm154
    %vm163 = vmand %vm147, %vm155
    %v164 = vsel %vm160, 1, 0
    %v165 = vsel %vm161, 1, 0
    %v166 = vsel %vm162, 1, 0
    %v167 = vsel %vm163, 1, 0
    %v168 = vcvt.s32.f32 %v164
    %v169 = vcvt.s32.f32 %v165
    %v170 = vcvt.s32.f32 %v166
    %v171 = vcvt.s32.f32 %v167
    %v172 = vsel %vm144, 1, 0
    %v173 = vsel %vm145, 1, 0
    %v174 = vsel %vm146, 1, 0
    %v175 = vsel %vm147, 1, 0
    %v176 = vcvt.s32.f32 %v172
    %v177 = vcvt.s32.f32 %v173
    %v178 = vcvt.s32.f32 %v174
    %v179 = vcvt.s32.f32 %v175
    %vm180 = vmand %vm144, %vm156
    %vm181 = vmand %vm145, %vm157
    %vm182 = vmand %vm146, %vm158
    %vm183 = vmand %vm147, %vm159
    %v184 = vsel %vm180, 1, 0
    %v185 = vsel %vm181, 1, 0
    %v186 = vsel %vm182, 1, 0
    %v187 = vsel %vm183, 1, 0
    %v188 = vcvt.s32.f32 %v184
    %v189 = vcvt.s32.f32 %v185
    %v190 = vcvt.s32.f32 %v186
    %v191 = vcvt.s32.f32 %v187
    %v192 = vsel %vm152, 1, 0
    %v193 = vsel %vm153, 1, 0
    %v194 = vsel %vm154, 1, 0
    %v195 = vsel %vm155, 1, 0
    %v196 = vcvt.s32.f32 %v192
    %v197 = vcvt.s32.f32 %v193
    %v198 = vcvt.s32.f32 %v194
    %v199 = vcvt.s32.f32 %v195
    %v200 = vsel %vm156, 1, 0
    %v201 = vsel %vm157, 1, 0
    %v202 = vsel %vm158, 1, 0
    %v203 = vsel %vm159, 1, 0
    %v204 = vcvt.s32.f32 %v200
    %v205 = vcvt.s32.f32 %v201
    %v206 = vcvt.s32.f32 %v202
    %v207 = vcvt.s32.f32 %v203
    %vm208 = vmand %vm148, %vm152
    %vm209 = vmand %vm149, %vm153
    %vm210 = vmand %vm150, %vm154
    %vm211 = vmand %vm151, %vm155
    %v212 = vsel %vm208, 1, 0
    %v213 = vsel %vm209, 1, 0
    %v214 = vsel %vm210, 1, 0
    %v215 = vsel %vm211, 1, 0
    %v216 = vcvt.s32.f32 %v212
    %v217 = vcvt.s32.f32 %v213
    %v218 = vcvt.s32.f32 %v214
    %v219 = vcvt.s32.f32 %v215
    %v220 = vsel %vm148, 1, 0
    %v221 = vsel %vm149, 1, 0
    %v222 = vsel %vm150, 1, 0
    %v223 = vsel %vm151, 1, 0
    %v224 = vcvt.s32.f32 %v220
    %v225 = vcvt.s32.f32 %v221
    %v226 = vcvt.s32.f32 %v222
    %v227 = vcvt.s32.f32 %v223
    %vm228 = vmand %vm148, %vm156
    %vm229 = vmand %vm149, %vm157
    %vm230 = vmand %vm150, %vm158
    %vm231 = vmand %vm151, %vm159
    %v232 = vsel %vm228, 1, 0
    %v233 = vsel %vm229, 1, 0
    %v234 = vsel %vm230, 1, 0
    %v235 = vsel %vm231, 1, 0
    %v236 = vcvt.s32.f32 %v232
    %v237 = vcvt.s32.f32 %v233
    %v238 = vcvt.s32.f32 %v234
    %v239 = vcvt.s32.f32 %v235
    %240 = vrot.lane.b32.xlu0 %v39, 17
    %v241 = vpop.permute.xlu0 %240
    %242 = vrot.lane.b32.xlu0 %v40, 17
    %v243 = vpop.permute.xlu0 %242
    %244 = vrot.lane.b32.xlu0 %v41, 17
    %v245 = vpop.permute.xlu0 %244
    %246 = vrot.lane.b32.xlu0 %v42, 17
    %v247 = vpop.permute.xlu0 %246
    %vm248 = vcmp.lt.s32.totalorder %v44, 17
    %v249 = vsel %vm248, %v245, %v247
    %v250 = vsel %vm248, %v243, %v245
    %v251 = vsel %vm248, %v241, %v243
    %v252 = vsel %vm248, %v247, %v241
    %v253 = vmul.f32 %v252, %v168
    %v254 = vmul.f32 %v251, %v169
    %v255 = vmul.f32 %v250, %v170
    %v256 = vmul.f32 %v249, %v171
    %257 = vrot.lane.b32.xlu0 %v39, 16
    %v258 = vpop.permute.xlu0 %257
    %259 = vrot.lane.b32.xlu0 %v40, 16
    %v260 = vpop.permute.xlu0 %259
    %261 = vrot.lane.b32.xlu0 %v41, 16
    %v262 = vpop.permute.xlu0 %261
    %263 = vrot.lane.b32.xlu0 %v42, 16
    %v264 = vpop.permute.xlu0 %263
    %vm265 = vcmp.lt.s32.totalorder %v44, 16
    %v266 = vsel %vm265, %v262, %v264
    %v267 = vsel %vm265, %v260, %v262
    %v268 = vsel %vm265, %v258, %v260
    %v269 = vsel %vm265, %v264, %v258
    %v270 = vmul.f32 %v269, %v176
    %v271 = vmul.f32 %v268, %v177
    %v272 = vmul.f32 %v267, %v178
    %v273 = vmul.f32 %v266, %v179
    %274 = vrot.lane.b32.xlu0 %v39, 15
    %v275 = vpop.permute.xlu0 %274
    %276 = vrot.lane.b32.xlu0 %v40, 15
    %v277 = vpop.permute.xlu0 %276
    %278 = vrot.lane.b32.xlu0 %v41, 15
    %v279 = vpop.permute.xlu0 %278
    %280 = vrot.lane.b32.xlu0 %v42, 15
    %v281 = vpop.permute.xlu0 %280
    %vm282 = vcmp.lt.s32.totalorder %v44, 15
    %v283 = vsel %vm282, %v279, %v281
    %v284 = vsel %vm282, %v277, %v279
    %v285 = vsel %vm282, %v275, %v277
    %v286 = vsel %vm282, %v281, %v275
    %v287 = vmul.f32 %v286, %v188
    %v288 = vmul.f32 %v285, %v189
    %v289 = vmul.f32 %v284, %v190
    %v290 = vmul.f32 %v283, %v191
    %291 = vrot.lane.b32.xlu0 %v39, 1
    %v292 = vpop.permute.xlu0 %291
    %293 = vrot.lane.b32.xlu0 %v40, 1
    %v294 = vpop.permute.xlu0 %293
    %295 = vrot.lane.b32.xlu0 %v41, 1
    %v296 = vpop.permute.xlu0 %295
    %297 = vrot.lane.b32.xlu0 %v42, 1
    %v298 = vpop.permute.xlu0 %297
    %vm299 = vcmp.lt.s32.totalorder %v44, 1
    %v300 = vsel %vm299, %v296, %v298
    %v301 = vsel %vm299, %v294, %v296
    %v302 = vsel %vm299, %v292, %v294
    %v303 = vsel %vm299, %v298, %v292
    %v304 = vmul.f32 %v303, %v196
    %v305 = vmul.f32 %v302, %v197
    %v306 = vmul.f32 %v301, %v198
    %v307 = vmul.f32 %v300, %v199
    %308 = vrot.lane.b32.xlu0 %v39, 127
    %v309 = vpop.permute.xlu0 %308
    %310 = vrot.lane.b32.xlu0 %v40, 127
    %v311 = vpop.permute.xlu0 %310
    %312 = vrot.lane.b32.xlu0 %v41, 127
    %v313 = vpop.permute.xlu0 %312
    %314 = vrot.lane.b32.xlu0 %v42, 127
    %v315 = vpop.permute.xlu0 %314
    %vm316 = vcmp.lt.s32.totalorder %v44, 127
    %v317 = vsel %vm316, %v313, %v315
    %v318 = vsel %vm316, %v311, %v313
    %v319 = vsel %vm316, %v309, %v311
    %v320 = vsel %vm316, %v315, %v309
    %v321 = vmul.f32 %v319, %v204
    %v322 = vmul.f32 %v318, %v205
    %v323 = vmul.f32 %v317, %v206
    %v324 = vmul.f32 %v320, %v207
    %325 = vrot.lane.b32.xlu0 %v39, 113
    %v326 = vpop.permute.xlu0 %325
    %327 = vrot.lane.b32.xlu0 %v40, 113
    %v328 = vpop.permute.xlu0 %327
    %329 = vrot.lane.b32.xlu0 %v41, 113
    %v330 = vpop.permute.xlu0 %329
    %331 = vrot.lane.b32.xlu0 %v42, 113
    %v332 = vpop.permute.xlu0 %331
    %vm333 = vcmp.lt.s32.totalorder %v44, 113
    %v334 = vsel %vm333, %v330, %v332
    %v335 = vsel %vm333, %v328, %v330
    %v336 = vsel %vm333, %v326, %v328
    %v337 = vsel %vm333, %v332, %v326
    %v338 = vmul.f32 %v336, %v216
    %v339 = vmul.f32 %v335, %v217
    %v340 = vmul.f32 %v334, %v218
    %v341 = vmul.f32 %v337, %v219
    %342 = vrot.lane.b32.xlu0 %v39, 112
    %v343 = vpop.permute.xlu0 %342
    %344 = vrot.lane.b32.xlu0 %v40, 112
    %v345 = vpop.permute.xlu0 %344
    %346 = vrot.lane.b32.xlu0 %v41, 112
    %v347 = vpop.permute.xlu0 %346
    %348 = vrot.lane.b32.xlu0 %v42, 112
    %v349 = vpop.permute.xlu0 %348
    %vm350 = vcmp.lt.s32.totalorder %v44, 112
    %v351 = vsel %vm350, %v347, %v349
    %v352 = vsel %vm350, %v345, %v347
    %v353 = vsel %vm350, %v343, %v345
    %v354 = vsel %vm350, %v349, %v343
    %v355 = vmul.f32 %v353, %v224
    %v356 = vmul.f32 %v352, %v225
    %v357 = vmul.f32 %v351, %v226
    %v358 = vmul.f32 %v354, %v227
    %359 = vrot.lane.b32.xlu0 %v39, 111
    %v360 = vpop.permute.xlu0 %359
    %361 = vrot.lane.b32.xlu0 %v40, 111
    %v362 = vpop.permute.xlu0 %361
    %363 = vrot.lane.b32.xlu0 %v41, 111
    %v364 = vpop.permute.xlu0 %363
    %365 = vrot.lane.b32.xlu0 %v42, 111
    %v366 = vpop.permute.xlu0 %365
    %vm367 = vcmp.lt.s32.totalorder %v44, 111
    %v368 = vsel %vm367, %v364, %v366
    %v369 = vsel %vm367, %v362, %v364
    %v370 = vsel %vm367, %v360, %v362
    %v371 = vsel %vm367, %v366, %v360
    %v372 = vmul.f32 %v370, %v236
    %v373 = vmul.f32 %v369, %v237
    %v374 = vmul.f32 %v368, %v238
    %v375 = vmul.f32 %v371, %v239
    %v376 = vld [vmem:[#allocation2] sm:$0xff]
    %vm377 = vcmask 588800
    %v379 = vsel %vm377, %v376, 0
    %381 = vmatprep.subr.mxu0 %v254
    %382 = vmatpush1.msra.mxu0 %v253
    %383 = vmatprep.subr.mxu0 %v271
    %384 = vmatpush1.msra.mxu0 %v270
    %385 = vmatprep.subr.mxu0 %v288
    %386 = vmatpush1.msra.mxu0 %v287
    %387 = vmatprep.subr.mxu0 %v305
    %388 = vmatpush1.msra.mxu0 %v304
    %389 = vmatprep.subr.mxu0 %v40
    %390 = vmatpush1.msra.mxu0 %v39
    %391 = vmatprep.subr.mxu0 %v322
    %392 = vmatpush1.msra.mxu0 %v321
    %393 = vmatprep.subr.mxu0 %v339
    %394 = vmatpush1.msra.mxu0 %v338
    %395 = vmatprep.subr.mxu0 %v356
    %396 = vmatpush1.msra.mxu0 %v355
    %397 = vmatprep.subr.mxu0 %v373
    %398 = vmatpush1.msra.mxu0 %v372
    %399 = vmatprep.subr.mxu0 0.0
    %400 = vmatpush1.msra.mxu0 0.0
    %401 = vmatprep.subr.mxu0 0.0
    %402 = vmatpush1.msra.mxu0 0.0
    %403 = vmatprep.subr.mxu0 0.0
    %404 = vmatpush1.msra.mxu0 0.0
    %405 = vmatprep.subr.mxu0 0.0
    %406 = vmatpush1.msra.mxu0 0.0
    %407 = vmatprep.subr.mxu0 0.0
    %408 = vmatpush1.msra.mxu0 0.0
    %409 = vmatprep.subr.mxu0 0.0
    %410 = vmatpush1.msra.mxu0 0.0
    %411 = vmatprep.subr.mxu0 0.0
    %412 = vmatpush1.msra.mxu0 0.0
    %413 = vmatprep.subr.mxu0 0.0
    %414 = vmatpush1.msra.mxu0 0.0
    %415 = vmatprep.subr.mxu0 0.0
    %416 = vmatpush1.msra.mxu0 0.0
    %417 = vmatprep.subr.mxu0 0.0
    %418 = vmatpush1.msra.mxu0 0.0
    %419 = vmatprep.subr.mxu0 0.0
    %420 = vmatpush1.msra.mxu0 0.0
    %421 = vmatprep.subr.mxu0 0.0
    %422 = vmatpush1.msra.mxu0 0.0
    %423 = vmatprep.subr.mxu0 0.0
    %424 = vmatpush1.msra.mxu0 0.0
    %425 = vmatprep.subr.mxu0 0.0
    %426 = vmatpush1.msra.mxu0 0.0
    %427 = vmatprep.subr.mxu0 0.0
    %428 = vmatpush1.msra.mxu0 0.0
    %429 = vmatprep.subr.mxu0 0.0
    %430 = vmatpush1.msra.mxu0 0.0
    %431 = vmatprep.subr.mxu0 0.0
    %432 = vmatpush1.msra.mxu0 0.0
    %433 = vmatprep.subr.mxu0 0.0
    %434 = vmatpush1.msra.mxu0 0.0
    %435 = vmatprep.subr.mxu0 0.0
    %436 = vmatpush1.msra.mxu0 0.0
    %437 = vmatprep.subr.mxu0 0.0
    %438 = vmatpush1.msra.mxu0 0.0
    %439 = vmatprep.subr.mxu0 0.0
    %440 = vmatpush1.msra.mxu0 0.0
    %441 = vmatprep.subr.mxu0 0.0
    %442 = vmatpush1.msra.mxu0 0.0
    %443 = vmatprep.subr.mxu0 0.0
    %444 = vmatpush1.msra.mxu0 0.0
    %445 = vmatprep.mubr.f32.mxu0 0.0
    %446 = vmatmul.mubr.f32.gmra.mrb[0].mxu0 %v379
    %v447 = vpop.f32.mrb[0].mxu0
    %v448 = vadd.f32 0.0, %v447
    %v449 = vpop.f32.mrb[0].mxu0
    %v450 = vadd.f32 0.0, %v449
    %451 = vdwg.mxu0
    %452 = vmatprep.subr.mxu0 %v256
    %453 = vmatpush1.msra.mxu0 %v255
    %454 = vmatprep.subr.mxu0 %v273
    %455 = vmatpush1.msra.mxu0 %v272
    %456 = vmatprep.subr.mxu0 %v290
    %457 = vmatpush1.msra.mxu0 %v289
    %458 = vmatprep.subr.mxu0 %v307
    %459 = vmatpush1.msra.mxu0 %v306
    %460 = vmatprep.subr.mxu0 %v42
    %461 = vmatpush1.msra.mxu0 %v41
    %462 = vmatprep.subr.mxu0 %v324
    %463 = vmatpush1.msra.mxu0 %v323
    %464 = vmatprep.subr.mxu0 %v341
    %465 = vmatpush1.msra.mxu0 %v340
    %466 = vmatprep.subr.mxu0 %v358
    %467 = vmatpush1.msra.mxu0 %v357
    %468 = vmatprep.subr.mxu0 %v375
    %469 = vmatpush1.msra.mxu0 %v374
    %470 = vmatprep.subr.mxu0 0.0
    %471 = vmatpush1.msra.mxu0 0.0
    %472 = vmatprep.subr.mxu0 0.0
    %473 = vmatpush1.msra.mxu0 0.0
    %474 = vmatprep.subr.mxu0 0.0
    %475 = vmatpush1.msra.mxu0 0.0
    %476 = vmatprep.subr.mxu0 0.0
    %477 = vmatpush1.msra.mxu0 0.0
    %478 = vmatprep.subr.mxu0 0.0
    %479 = vmatpush1.msra.mxu0 0.0
    %480 = vmatprep.subr.mxu0 0.0
    %481 = vmatpush1.msra.mxu0 0.0
    %482 = vmatprep.subr.mxu0 0.0
    %483 = vmatpush1.msra.mxu0 0.0
    %484 = vmatprep.subr.mxu0 0.0
    %485 = vmatpush1.msra.mxu0 0.0
    %486 = vmatprep.subr.mxu0 0.0
    %487 = vmatpush1.msra.mxu0 0.0
    %488 = vmatprep.subr.mxu0 0.0
    %489 = vmatpush1.msra.mxu0 0.0
    %490 = vmatprep.subr.mxu0 0.0
    %491 = vmatpush1.msra.mxu0 0.0
    %492 = vmatprep.subr.mxu0 0.0
    %493 = vmatpush1.msra.mxu0 0.0
    %494 = vmatprep.subr.mxu0 0.0
    %495 = vmatpush1.msra.mxu0 0.0
    %496 = vmatprep.subr.mxu0 0.0
    %497 = vmatpush1.msra.mxu0 0.0
    %498 = vmatprep.subr.mxu0 0.0
    %499 = vmatpush1.msra.mxu0 0.0
    %500 = vmatprep.subr.mxu0 0.0
    %501 = vmatpush1.msra.mxu0 0.0
    %502 = vmatprep.subr.mxu0 0.0
    %503 = vmatpush1.msra.mxu0 0.0
    %504 = vmatprep.subr.mxu0 0.0
    %505 = vmatpush1.msra.mxu0 0.0
    %506 = vmatprep.subr.mxu0 0.0
    %507 = vmatpush1.msra.mxu0 0.0
    %508 = vmatprep.subr.mxu0 0.0
    %509 = vmatpush1.msra.mxu0 0.0
    %510 = vmatprep.subr.mxu0 0.0
    %511 = vmatpush1.msra.mxu0 0.0
    %512 = vmatprep.subr.mxu0 0.0
    %513 = vmatpush1.msra.mxu0 0.0
    %514 = vmatprep.subr.mxu0 0.0
    %515 = vmatpush1.msra.mxu0 0.0
    %516 = vmatprep.mubr.f32.mxu0 0.0
    %517 = vmatmul.mubr.f32.gmra.mrb[0].mxu0 %v379
    %v518 = vpop.f32.mrb[0].mxu0
    %v519 = vadd.f32 0.0, %v518
    %v520 = vpop.f32.mrb[0].mxu0
    %v521 = vadd.f32 0.0, %v520
    %522 = vdwg.mxu0
    %v523 = vadd.f32 %v448, %v450
    %v524 = vadd.f32 %v523, %v519
    %v525 = vadd.f32 %v524, %v521
    %526 = vadd.xlane.f32.xlu0 %v525
    %v527 = vpop.xlane.xlu0 %526
    %v528 = vmul.f32 %v527, 0.001953125
    %v529 = vsub.f32 %v448, %v528
    %v530 = vsub.f32 %v450, %v528
    %v531 = vsub.f32 %v519, %v528
    %v532 = vsub.f32 %v521, %v528
    %v533 = vmul.f32 %v529, %v529
    %v534 = vmul.f32 %v530, %v530
    %v535 = vmul.f32 %v531, %v531
    %v536 = vmul.f32 %v532, %v532
    %v537 = vadd.f32 %v533, %v534
    %v538 = vadd.f32 %v537, %v535
    %v539 = vadd.f32 %v538, %v536
    %540 = vadd.xlane.f32.xlu0 %v539
    %v541 = vpop.xlane.xlu0 %540
    %v542 = vmul.f32 %v541, 0.001953125
    %v543 = vld [vmem:[%s3] sm:$0xff]
    %v544 = vadd.f32 %v542, 1e-05
    %v545 = vrsqrt.pop %v544
    %v546 = vmul.f32 %v543, %v545
    %548 = vset.pattern.permute.xlu0 0
    %549 = vperm.xlu0 %548, %v546
    %v550 = vpop.permute.xlu0 %549
    %v552 = vmul.f32 %v448, %v550
    %v553 = vmul.f32 %v450, %v550
    %v554 = vmul.f32 %v519, %v550
    %v555 = vmul.f32 %v521, %v550
    %v556 = vld [vmem:[%s4] sm:$0xff]
    %v557 = vmul.f32 %v528, %v546
    %v558 = vsub.f32 %v556, %v557
    %560 = vset.pattern.permute.xlu0 0
    %561 = vperm.xlu0 %560, %v558
    %v562 = vpop.permute.xlu0 %561
    %v564 = vadd.f32 %v552, %v562
    %v565 = vadd.f32 %v553, %v562
    %v566 = vadd.f32 %v554, %v562
    %v567 = vadd.f32 %v555, %v562
    %v568 = vmax.f32 %v564, 0.0
    %v569 = vmax.f32 %v565, 0.0
    %v570 = vmax.f32 %v566, 0.0
    %v571 = vmax.f32 %v567, 0.0
    %572 = vrot.lane.b32.xlu0 %v568, 17
    %v573 = vpop.permute.xlu0 %572
    %574 = vrot.lane.b32.xlu0 %v569, 17
    %v575 = vpop.permute.xlu0 %574
    %576 = vrot.lane.b32.xlu0 %v570, 17
    %v577 = vpop.permute.xlu0 %576
    %578 = vrot.lane.b32.xlu0 %v571, 17
    %v579 = vpop.permute.xlu0 %578
    %v580 = vsel %vm248, %v577, %v579
    %v581 = vsel %vm248, %v575, %v577
    %v582 = vsel %vm248, %v573, %v575
    %v583 = vsel %vm248, %v579, %v573
    %v584 = vmul.f32 %v583, %v168
    %v585 = vmul.f32 %v582, %v169
    %v586 = vmul.f32 %v581, %v170
    %v587 = vmul.f32 %v580, %v171
    %588 = vrot.lane.b32.xlu0 %v568, 16
    %v589 = vpop.permute.xlu0 %588
    %590 = vrot.lane.b32.xlu0 %v569, 16
    %v591 = vpop.permute.xlu0 %590
    %592 = vrot.lane.b32.xlu0 %v570, 16
    %v593 = vpop.permute.xlu0 %592
    %594 = vrot.lane.b32.xlu0 %v571, 16
    %v595 = vpop.permute.xlu0 %594
    %v596 = vsel %vm265, %v593, %v595
    %v597 = vsel %vm265, %v591, %v593
    %v598 = vsel %vm265, %v589, %v591
    %v599 = vsel %vm265, %v595, %v589
    %v600 = vmul.f32 %v599, %v176
    %v601 = vmul.f32 %v598, %v177
    %v602 = vmul.f32 %v597, %v178
    %v603 = vmul.f32 %v596, %v179
    %604 = vrot.lane.b32.xlu0 %v568, 15
    %v605 = vpop.permute.xlu0 %604
    %606 = vrot.lane.b32.xlu0 %v569, 15
    %v607 = vpop.permute.xlu0 %606
    %608 = vrot.lane.b32.xlu0 %v570, 15
    %v609 = vpop.permute.xlu0 %608
    %610 = vrot.lane.b32.xlu0 %v571, 15
    %v611 = vpop.permute.xlu0 %610
    %v612 = vsel %vm282, %v609, %v611
    %v613 = vsel %vm282, %v607, %v609
    %v614 = vsel %vm282, %v605, %v607
    %v615 = vsel %vm282, %v611, %v605
    %v616 = vmul.f32 %v615, %v188
    %v617 = vmul.f32 %v614, %v189
    %v618 = vmul.f32 %v613, %v190
    %v619 = vmul.f32 %v612, %v191
    %620 = vrot.lane.b32.xlu0 %v568, 1
    %v621 = vpop.permute.xlu0 %620
    %622 = vrot.lane.b32.xlu0 %v569, 1
    %v623 = vpop.permute.xlu0 %622
    %624 = vrot.lane.b32.xlu0 %v570, 1
    %v625 = vpop.permute.xlu0 %624
    %626 = vrot.lane.b32.xlu0 %v571, 1
    %v627 = vpop.permute.xlu0 %626
    %v628 = vsel %vm299, %v625, %v627
    %v629 = vsel %vm299, %v623, %v625
    %v630 = vsel %vm299, %v621, %v623
    %v631 = vsel %vm299, %v627, %v621
    %v632 = vmul.f32 %v631, %v196
    %v633 = vmul.f32 %v630, %v197
    %v634 = vmul.f32 %v629, %v198
    %v635 = vmul.f32 %v628, %v199
    %636 = vrot.lane.b32.xlu0 %v568, 127
    %v637 = vpop.permute.xlu0 %636
    %638 = vrot.lane.b32.xlu0 %v569, 127
    %v639 = vpop.permute.xlu0 %638
    %640 = vrot.lane.b32.xlu0 %v570, 127
    %v641 = vpop.permute.xlu0 %640
    %642 = vrot.lane.b32.xlu0 %v571, 127
    %v643 = vpop.permute.xlu0 %642
    %v644 = vsel %vm316, %v641, %v643
    %v645 = vsel %vm316, %v639, %v641
    %v646 = vsel %vm316, %v637, %v639
    %v647 = vsel %vm316, %v643, %v637
    %v648 = vmul.f32 %v646, %v204
    %v649 = vmul.f32 %v645, %v205
    %v650 = vmul.f32 %v644, %v206
    %v651 = vmul.f32 %v647, %v207
    %652 = vrot.lane.b32.xlu0 %v568, 113
    %v653 = vpop.permute.xlu0 %652
    %654 = vrot.lane.b32.xlu0 %v569, 113
    %v655 = vpop.permute.xlu0 %654
    %656 = vrot.lane.b32.xlu0 %v570, 113
    %v657 = vpop.permute.xlu0 %656
    %658 = vrot.lane.b32.xlu0 %v571, 113
    %v659 = vpop.permute.xlu0 %658
    %v660 = vsel %vm333, %v657, %v659
    %v661 = vsel %vm333, %v655, %v657
    %v662 = vsel %vm333, %v653, %v655
    %v663 = vsel %vm333, %v659, %v653
    %v664 = vmul.f32 %v662, %v216
    %v665 = vmul.f32 %v661, %v217
    %v666 = vmul.f32 %v660, %v218
    %v667 = vmul.f32 %v663, %v219
    %668 = vrot.lane.b32.xlu0 %v568, 112
    %v669 = vpop.permute.xlu0 %668
    %670 = vrot.lane.b32.xlu0 %v569, 112
    %v671 = vpop.permute.xlu0 %670
    %672 = vrot.lane.b32.xlu0 %v570, 112
    %v673 = vpop.permute.xlu0 %672
    %674 = vrot.lane.b32.xlu0 %v571, 112
    %v675 = vpop.permute.xlu0 %674
    %v676 = vsel %vm350, %v673, %v675
    %v677 = vsel %vm350, %v671, %v673
    %v678 = vsel %vm350, %v669, %v671
    %v679 = vsel %vm350, %v675, %v669
    %v680 = vmul.f32 %v678, %v224
    %v681 = vmul.f32 %v677, %v225
    %v682 = vmul.f32 %v676, %v226
    %v683 = vmul.f32 %v679, %v227
    %684 = vrot.lane.b32.xlu0 %v568, 111
    %v685 = vpop.permute.xlu0 %684
    %686 = vrot.lane.b32.xlu0 %v569, 111
    %v687 = vpop.permute.xlu0 %686
    %688 = vrot.lane.b32.xlu0 %v570, 111
    %v689 = vpop.permute.xlu0 %688
    %690 = vrot.lane.b32.xlu0 %v571, 111
    %v691 = vpop.permute.xlu0 %690
    %v692 = vsel %vm367, %v689, %v691
    %v693 = vsel %vm367, %v687, %v689
    %v694 = vsel %vm367, %v685, %v687
    %v695 = vsel %vm367, %v691, %v685
    %v696 = vmul.f32 %v694, %v236
    %v697 = vmul.f32 %v693, %v237
    %v698 = vmul.f32 %v692, %v238
    %v699 = vmul.f32 %v695, %v239
    %v700 = vld [vmem:[%s2] sm:$0xff]
    %v702 = vsel %vm377, %v700, 0
    %704 = vmatprep.subr.mxu0 %v585
    %705 = vmatpush1.msra.mxu0 %v584
    %706 = vmatprep.subr.mxu0 %v601
    %707 = vmatpush1.msra.mxu0 %v600
    %708 = vmatprep.subr.mxu0 %v617
    %709 = vmatpush1.msra.mxu0 %v616
    %710 = vmatprep.subr.mxu0 %v633
    %711 = vmatpush1.msra.mxu0 %v632
    %712 = vmatprep.subr.mxu0 %v569
    %713 = vmatpush1.msra.mxu0 %v568
    %714 = vmatprep.subr.mxu0 %v649
    %715 = vmatpush1.msra.mxu0 %v648
    %716 = vmatprep.subr.mxu0 %v665
    %717 = vmatpush1.msra.mxu0 %v664
    %718 = vmatprep.subr.mxu0 %v681
    %719 = vmatpush1.msra.mxu0 %v680
    %720 = vmatprep.subr.mxu0 %v697
    %721 = vmatpush1.msra.mxu0 %v696
    %722 = vmatprep.subr.mxu0 0.0
    %723 = vmatpush1.msra.mxu0 0.0
    %724 = vmatprep.subr.mxu0 0.0
    %725 = vmatpush1.msra.mxu0 0.0
    %726 = vmatprep.subr.mxu0 0.0
    %727 = vmatpush1.msra.mxu0 0.0
    %728 = vmatprep.subr.mxu0 0.0
    %729 = vmatpush1.msra.mxu0 0.0
    %730 = vmatprep.subr.mxu0 0.0
    %731 = vmatpush1.msra.mxu0 0.0
    %732 = vmatprep.subr.mxu0 0.0
    %733 = vmatpush1.msra.mxu0 0.0
    %734 = vmatprep.subr.mxu0 0.0
    %735 = vmatpush1.msra.mxu0 0.0
    %736 = vmatprep.subr.mxu0 0.0
    %737 = vmatpush1.msra.mxu0 0.0
    %738 = vmatprep.subr.mxu0 0.0
    %739 = vmatpush1.msra.mxu0 0.0
    %740 = vmatprep.subr.mxu0 0.0
    %741 = vmatpush1.msra.mxu0 0.0
    %742 = vmatprep.subr.mxu0 0.0
    %743 = vmatpush1.msra.mxu0 0.0
    %744 = vmatprep.subr.mxu0 0.0
    %745 = vmatpush1.msra.mxu0 0.0
    %746 = vmatprep.subr.mxu0 0.0
    %747 = vmatpush1.msra.mxu0 0.0
    %748 = vmatprep.subr.mxu0 0.0
    %749 = vmatpush1.msra.mxu0 0.0
    %750 = vmatprep.subr.mxu0 0.0
    %751 = vmatpush1.msra.mxu0 0.0
    %752 = vmatprep.subr.mxu0 0.0
    %753 = vmatpush1.msra.mxu0 0.0
    %754 = vmatprep.subr.mxu0 0.0
    %755 = vmatpush1.msra.mxu0 0.0
    %756 = vmatprep.subr.mxu0 0.0
    %757 = vmatpush1.msra.mxu0 0.0
    %758 = vmatprep.subr.mxu0 0.0
    %759 = vmatpush1.msra.mxu0 0.0
    %760 = vmatprep.subr.mxu0 0.0
    %761 = vmatpush1.msra.mxu0 0.0
    %762 = vmatprep.subr.mxu0 0.0
    %763 = vmatpush1.msra.mxu0 0.0
    %764 = vmatprep.subr.mxu0 0.0
    %765 = vmatpush1.msra.mxu0 0.0
    %766 = vmatprep.subr.mxu0 0.0
    %767 = vmatpush1.msra.mxu0 0.0
    %768 = vmatprep.mubr.f32.mxu0 0.0
    %769 = vmatmul.mubr.f32.gmra.mrb[0].mxu0 %v702
    %v770 = vpop.f32.mrb[0].mxu0
    %v771 = vadd.f32 0.0, %v770
    %v772 = vpop.f32.mrb[0].mxu0
    %v773 = vadd.f32 0.0, %v772
    %774 = vdwg.mxu0
    %775 = vmatprep.subr.mxu0 %v587
    %776 = vmatpush1.msra.mxu0 %v586
    %777 = vmatprep.subr.mxu0 %v603
    %778 = vmatpush1.msra.mxu0 %v602
    %779 = vmatprep.subr.mxu0 %v619
    %780 = vmatpush1.msra.mxu0 %v618
    %781 = vmatprep.subr.mxu0 %v635
    %782 = vmatpush1.msra.mxu0 %v634
    %783 = vmatprep.subr.mxu0 %v571
    %784 = vmatpush1.msra.mxu0 %v570
    %785 = vmatprep.subr.mxu0 %v651
    %786 = vmatpush1.msra.mxu0 %v650
    %787 = vmatprep.subr.mxu0 %v667
    %788 = vmatpush1.msra.mxu0 %v666
    %789 = vmatprep.subr.mxu0 %v683
    %790 = vmatpush1.msra.mxu0 %v682
    %791 = vmatprep.subr.mxu0 %v699
    %792 = vmatpush1.msra.mxu0 %v698
    %793 = vmatprep.subr.mxu0 0.0
    %794 = vmatpush1.msra.mxu0 0.0
    %795 = vmatprep.subr.mxu0 0.0
    %796 = vmatpush1.msra.mxu0 0.0
    %797 = vmatprep.subr.mxu0 0.0
    %798 = vmatpush1.msra.mxu0 0.0
    %799 = vmatprep.subr.mxu0 0.0
    %800 = vmatpush1.msra.mxu0 0.0
    %801 = vmatprep.subr.mxu0 0.0
    %802 = vmatpush1.msra.mxu0 0.0
    %803 = vmatprep.subr.mxu0 0.0
    %804 = vmatpush1.msra.mxu0 0.0
    %805 = vmatprep.subr.mxu0 0.0
    %806 = vmatpush1.msra.mxu0 0.0
    %807 = vmatprep.subr.mxu0 0.0
    %808 = vmatpush1.msra.mxu0 0.0
    %809 = vmatprep.subr.mxu0 0.0
    %810 = vmatpush1.msra.mxu0 0.0
    %811 = vmatprep.subr.mxu0 0.0
    %812 = vmatpush1.msra.mxu0 0.0
    %813 = vmatprep.subr.mxu0 0.0
    %814 = vmatpush1.msra.mxu0 0.0
    %815 = vmatprep.subr.mxu0 0.0
    %816 = vmatpush1.msra.mxu0 0.0
    %817 = vmatprep.subr.mxu0 0.0
    %818 = vmatpush1.msra.mxu0 0.0
    %819 = vmatprep.subr.mxu0 0.0
    %820 = vmatpush1.msra.mxu0 0.0
    %821 = vmatprep.subr.mxu0 0.0
    %822 = vmatpush1.msra.mxu0 0.0
    %823 = vmatprep.subr.mxu0 0.0
    %824 = vmatpush1.msra.mxu0 0.0
    %825 = vmatprep.subr.mxu0 0.0
    %826 = vmatpush1.msra.mxu0 0.0
    %827 = vmatprep.subr.mxu0 0.0
    %828 = vmatpush1.msra.mxu0 0.0
    %829 = vmatprep.subr.mxu0 0.0
    %830 = vmatpush1.msra.mxu0 0.0
    %831 = vmatprep.subr.mxu0 0.0
    %832 = vmatpush1.msra.mxu0 0.0
    %833 = vmatprep.subr.mxu0 0.0
    %834 = vmatpush1.msra.mxu0 0.0
    %835 = vmatprep.subr.mxu0 0.0
    %836 = vmatpush1.msra.mxu0 0.0
    %837 = vmatprep.subr.mxu0 0.0
    %838 = vmatpush1.msra.mxu0 0.0
    %839 = vmatprep.mubr.f32.mxu0 0.0
    %840 = vmatmul.mubr.f32.gmra.mrb[0].mxu0 %v702
    %v841 = vpop.f32.mrb[0].mxu0
    %v842 = vadd.f32 0.0, %v841
    %v843 = vpop.f32.mrb[0].mxu0
    %v844 = vadd.f32 0.0, %v843
    %845 = vdwg.mxu0
    %v846 = vadd.f32 %v771, %v773
    %v847 = vadd.f32 %v846, %v842
    %v848 = vadd.f32 %v847, %v844
    %849 = vadd.xlane.f32.xlu0 %v848
    %v850 = vpop.xlane.xlu0 %849
    %v851 = vmul.f32 %v850, 0.001953125
    %v852 = vsub.f32 %v771, %v851
    %v853 = vsub.f32 %v773, %v851
    %v854 = vsub.f32 %v842, %v851
    %v855 = vsub.f32 %v844, %v851
    %v856 = vmul.f32 %v852, %v852
    %v857 = vmul.f32 %v853, %v853
    %v858 = vmul.f32 %v854, %v854
    %v859 = vmul.f32 %v855, %v855
    %v860 = vadd.f32 %v856, %v857
    %v861 = vadd.f32 %v860, %v858
    %v862 = vadd.f32 %v861, %v859
    %863 = vadd.xlane.f32.xlu0 %v862
    %v864 = vpop.xlane.xlu0 %863
    %v865 = vmul.f32 %v864, 0.001953125
    %v866 = vld [vmem:[%s5] sm:$0xff]
    %v867 = vadd.f32 %v865, 1e-05
    %v868 = vrsqrt.pop %v867
    %v869 = vmul.f32 %v866, %v868
    %871 = vset.pattern.permute.xlu0 0
    %872 = vperm.xlu0 %871, %v869
    %v873 = vpop.permute.xlu0 %872
    %v875 = vmul.f32 %v771, %v873
    %v876 = vmul.f32 %v773, %v873
    %v877 = vmul.f32 %v842, %v873
    %v878 = vmul.f32 %v844, %v873
    %v879 = vld [vmem:[%s6] sm:$0xff]
    %v880 = vmul.f32 %v851, %v869
    %v881 = vsub.f32 %v879, %v880
    %883 = vset.pattern.permute.xlu0 0
    %884 = vperm.xlu0 %883, %v881
    %v885 = vpop.permute.xlu0 %884
    %v887 = vadd.f32 %v875, %v885
    %v888 = vadd.f32 %v876, %v885
    %v889 = vadd.f32 %v877, %v885
    %v890 = vadd.f32 %v878, %v885
    %v891 = vadd.f32 %v887, %v39
    %v892 = vadd.f32 %v888, %v40
    %v893 = vadd.f32 %v889, %v41
    %v894 = vadd.f32 %v890, %v42
    %v895 = vmax.f32 %v891, 0.0
    %v896 = vmax.f32 %v892, 0.0
    %v897 = vmax.f32 %v893, 0.0
    %v898 = vmax.f32 %v894, 0.0
    %899 = vst [vmem:[#allocation5] sm:$0xff] %v895
    %900 = vst [vmem:[#allocation5 + $0x8] sm:$0xff] %v896
    %901 = vst [vmem:[#allocation5 + $0x10] sm:$0xff] %v897
    %902 = vst [vmem:[#allocation5 + $0x18] sm:$0xff] %v898
    // Predicated region
    $region34: #{tpu_custom_call.1} parent=1 // pred_check
      _
    $region35: #{tpu_custom_call.1} parent=1 // pred_check_branch
      %904 = sbr.rel (0) target = $region37
    $region36: #{tpu_custom_call.1} parent=1 // pred_region
      %s906 = ssub.s32 512, 512
      %907 = vsyncadd [#allocation4], %s906
      %s909 = sshll.u32 [#allocation5], 4
      %s910 = int_to_ptr.vmem [resolvable:$true] %s909
      %912 = dma.vmem_to_hbm [thread:$0]  %s910, 512, %s7, [#allocation4]
    $region37: #{tpu_custom_call.1} parent=1 // pred_fallthru
      _
    // Predicated region
    $region38: #{tpu_custom_call.1} parent=1 // pred_check
      _
    $region39: #{tpu_custom_call.1} parent=1 // pred_check_branch
      %914 = sbr.rel (0) target = $region41
    $region40: #{tpu_custom_call.1} parent=1 // pred_region
      %915 = dma.done [#allocation4], 512
    $region41: #{tpu_custom_call.1} parent=1 // pred_fallthru
      _
    %916 = vsyncpa [#allocation3], 1
    %917 = vsyncpa [#allocation4], 1

</llo_original>
